<compile_context>
chip_gen: v6e
topology: v6e:2x2x1
jax: 0.10.0
libtpu: 0.0.40
codegen_flags: <defaults>
</compile_context>

<pallas_src>
import functools
import math

import jax
import jax.numpy as jnp
from jax.experimental import pallas as pl
from jax.experimental.pallas import tpu as pltpu


def _linres_kernel(x_ref, w1_ref, w2_ref, b2_ref, w3_ref, b3_ref, o_ref, *,
                   ew_dtype, mxu_dtype):
    """One batch tile, batch-on-lanes layout.

    x_ref  : (8,  TB)  input tile, f32; row 7 is the constant-1 row (fused b1)
    w1_ref : (64, 8)   [w1 | b1], f32
    w2_ref : (64, 64)  MXU dtype (bf16 on fast path)
    b2_ref : (64, 1)   elementwise dtype
    w3_ref : (1,  64)  MXU dtype
    b3_ref : (1,  1)   f32
    o_ref  : (1,  TB)  lane-dense output tile, f32
    """
    # Layer 1 (+ fused bias): (64,8) @ (8,TB) -> (64,TB), f32 accumulation.
    h1 = jnp.dot(w1_ref[...], x_ref[...], preferred_element_type=jnp.float32)
    h1 = jnp.maximum(h1.astype(ew_dtype), 0).astype(mxu_dtype)
    # Layer 2: (64,64) @ (64,TB) -> (64,TB), f32 accumulation on the MXU.
    h2 = jnp.dot(w2_ref[...], h1, preferred_element_type=jnp.float32)
    h2 = jnp.maximum(h2.astype(ew_dtype) + b2_ref[...], 0).astype(mxu_dtype)
    # Layer 3 on the MXU: (1,64) @ (64,TB) -> (1,TB), f32 accumulation + f32 bias.
    out = jnp.dot(w3_ref[...], h2, preferred_element_type=jnp.float32) + b3_ref[...]
    o_ref[...] = out.astype(o_ref.dtype)


def _round_up(n, m):
    return ((n + m - 1) // m) * m


def linres_forward(x, params, *, tb_max=8192, target_steps=4, use_bf16=True):
    """x: (B, 7) float32. params in PyTorch layout ((out,in) weights, (out,) biases).

    Returns (B,) float32, matching torch's `x.reshape(-1)`.
    """
    w1, b1, w2, b2, w3, b3 = params
    B, f_in = x.shape
    hidden = w1.shape[0]
    f_aug = f_in + 1                                  # +1 constant-1 row for fused b1

    # dtype policy: bf16 MXU operands everywhere on the fast path; bf16 elementwise
    # only on chips with a bf16 VALU (v6e / v7x). v5e and older keep f32 elementwise.
    kind = jax.devices()[0].device_kind.lower()
    old_gen = any(t in kind for t in ("v2", "v3", "v4", "v5"))
    mxu_dtype = jnp.bfloat16 if use_bf16 else jnp.float32
    ew_dtype = jnp.bfloat16 if (use_bf16 and not old_gen) else jnp.float32

    # --- Batch tiling: big lane tiles (up to tb_max), but keep >= target_steps grid
    # steps for large B so the "parallel" axis shards across v7x's 2 TensorCores.
    units = pl.cdiv(B, 128)                           # 128-lane column groups needed
    tb_units = max(1, min(tb_max // 128, pl.cdiv(units, target_steps)))
    tb = tb_units * 128
    grid = pl.cdiv(units, tb_units)
    b_pad = grid * tb

    # --- Layout plumbing (outside the hot loop) -------------------------------
    # Append the constant-1 feature row (fuses b1 into the layer-1 matmul), zero-pad
    # the batch, and put batch on lanes. Layer-1 operands stay f32 for accuracy.
    x_aug = jnp.concatenate(
        [x.astype(jnp.float32), jnp.ones((B, 1), jnp.float32)], axis=1)   # (B, 8)
    x_t = jnp.pad(x_aug, ((0, b_pad - B), (0, 0))).T                      # (8, b_pad)

    w1a = jnp.concatenate(
        [w1.astype(jnp.float32), b1.reshape(hidden, 1).astype(jnp.float32)],
        axis=1)                                                           # (64, 8)
    w2m = w2.astype(mxu_dtype)                                            # (64, 64)
    b2c = b2.reshape(hidden, 1).astype(ew_dtype)                          # (64, 1)
    w3r = w3.reshape(1, hidden).astype(mxu_dtype)                         # (1, 64)
    b3c = b3.reshape(1, 1).astype(jnp.float32)                            # (1, 1)

    # Constant index_map -> params DMA'd once and stay VMEM-resident across the grid.
    const = lambda arr: pl.BlockSpec(arr.shape, lambda i: (0, 0))

    flops = 2 * b_pad * (hidden * f_aug + hidden * hidden + hidden)
    bytes_accessed = (x_t.size * 4 + b_pad * 4 + w1a.size * 4
                      + w2m.size * w2m.dtype.itemsize + b2c.size * b2c.dtype.itemsize
                      + w3r.size * w3r.dtype.itemsize + 4)

    kernel = functools.partial(_linres_kernel, ew_dtype=ew_dtype, mxu_dtype=mxu_dtype)

    out = pl.pallas_call(
        kernel,
        out_shape=jax.ShapeDtypeStruct((1, b_pad), jnp.float32),
        grid_spec=pl.GridSpec(
            grid=(grid,),
            in_specs=[
                pl.BlockSpec((f_aug, tb), lambda i: (0, i)),   # x tile: batch on lanes
                const(w1a),
                const(w2m), const(b2c),
                const(w3r), const(b3c),
            ],
            out_specs=pl.BlockSpec((1, tb), lambda i: (0, i)),  # lane-dense output
        ),
        compiler_params=pltpu.CompilerParams(
            dimension_semantics=("parallel",)),                 # megacore-shardable
        cost_estimate=pl.CostEstimate(
            flops=flops, transcendentals=0, bytes_accessed=bytes_accessed),
    )(x_t, w1a, w2m, b2c, w3r, b3c)
    return out.reshape(-1)[:B]


def init_params(key, input_shape=7, hidden=64):
    # PyTorch-style init, PyTorch layout: weight (out, in), bias (out,).
    ks = jax.random.split(key, 6)

    def lin(kw, kb, fan_in, fan_out):
        bound = 1.0 / math.sqrt(fan_in)
        w = jax.random.uniform(kw, (fan_out, fan_in), jnp.float32, -bound, bound)
        b = jax.random.uniform(kb, (fan_out,), jnp.float32, -bound, bound)
        return w, b

    w1, b1 = lin(ks[0], ks[1], input_shape, hidden)
    w2, b2 = lin(ks[2], ks[3], hidden, hidden)
    w3, b3 = lin(ks[4], ks[5], hidden, 1)
    return (w1, b1, w2, b2, w3, b3)


def _reference(x, params):
    w1, b1, w2, b2, w3, b3 = params
    h1 = jnp.maximum(x @ w1.T + b1, 0.0)
    h2 = jnp.maximum(h1 @ w2.T + b2, 0.0)
    return (h2 @ w3.T + b3).reshape(-1)


if __name__ == "__main__":
    input_shape = 7
    batch = 300   # not a multiple of 128: exercises padding and multiple grid steps

    key = jax.random.PRNGKey(0)
    kx, kp = jax.random.split(key)
    x = jax.random.normal(kx, (batch, input_shape), jnp.float32)
    params = init_params(kp, input_shape=input_shape, hidden=64)

    ref = _reference(x, params)

    # Strict check of the kernel logic with f32 MXU + f32 elementwise everywhere.
    out_f32 = jax.block_until_ready(linres_forward(x, params, use_bf16=False))
    assert out_f32.shape == (batch,)
    assert jnp.allclose(out_f32, ref, atol=1e-5, rtol=1e-5)

    # Default fast path: f32 layer 1, bf16 MXU operands for layers 2/3, bf16
    # elementwise on v6e/v7x (f32 on v5e), f32 accumulation (looser tolerance).
    out = jax.block_until_ready(linres_forward(x, params))
    assert out.shape == (batch,)
    assert jnp.allclose(out, ref, atol=5e-2, rtol=5e-2)

    print("KERNEL_OK")
</pallas_src>

<mosaic_0001>
module attributes {stable_mosaic.version = 11 : i64} {
  func.func @_linres_kernel(%arg0: i32, %arg1: memref<8x128xf32, #tpu.memory_space<vmem>>, %arg2: memref<64x8xf32, #tpu.memory_space<vmem>>, %arg3: memref<64x64xf32, #tpu.memory_space<vmem>>, %arg4: memref<64x1xf32, #tpu.memory_space<vmem>>, %arg5: memref<1x64xf32, #tpu.memory_space<vmem>>, %arg6: memref<1x1xf32, #tpu.memory_space<vmem>>, %arg7: memref<1x128xf32, #tpu.memory_space<vmem>>) attributes {dimension_semantics = [#tpu.dimension_semantics<parallel>], iteration_bounds = array<i64: 3>, scalar_prefetch = 0 : i64, scratch_operands = 0 : i64, tpu.core_type = #tpu.core_type<tc>, window_params = [{transform_indices = @transform_0, window_bounds = array<i64: 8, 128>}, {pipeline_mode = #tpu.pipeline_mode<synchronous>, transform_indices = @transform_1, window_bounds = array<i64: 64, 8>}, {pipeline_mode = #tpu.pipeline_mode<synchronous>, transform_indices = @transform_2, window_bounds = array<i64: 64, 64>}, {pipeline_mode = #tpu.pipeline_mode<synchronous>, transform_indices = @transform_3, window_bounds = array<i64: 64, 1>}, {pipeline_mode = #tpu.pipeline_mode<synchronous>, transform_indices = @transform_4, window_bounds = array<i64: 1, 64>}, {pipeline_mode = #tpu.pipeline_mode<synchronous>, transform_indices = @transform_5, window_bounds = array<i64: 1, 1>}, {transform_indices = @transform_6, window_bounds = array<i64: 1, 128>}]} {
    %c0 = arith.constant 0 : index
    %c0_0 = arith.constant 0 : index
    %0 = vector.load %arg2[%c0, %c0_0] : memref<64x8xf32, #tpu.memory_space<vmem>>, vector<64x8xf32>
    %c0_1 = arith.constant 0 : index
    %c0_2 = arith.constant 0 : index
    %1 = vector.load %arg1[%c0_1, %c0_2] : memref<8x128xf32, #tpu.memory_space<vmem>>, vector<8x128xf32>
    %cst = arith.constant dense<0.000000e+00> : vector<64x128xf32>
    %2 = tpu.matmul %0, %1, %cst {dimension_numbers = #tpu.dot_dimension_numbers<[1], [0], [0], [1], [0, 0, 1, 1], [], []>} : vector<64x8xf32>, vector<8x128xf32>, vector<64x128xf32> -> vector<64x128xf32>
    %cst_3 = arith.constant 0.000000e+00 : f32
    %3 = vector.broadcast %cst_3 : f32 to vector<64x128xf32>
    %4 = arith.maximumf %2, %3 : vector<64x128xf32>
    %c0_4 = arith.constant 0 : index
    %c0_5 = arith.constant 0 : index
    %5 = vector.load %arg3[%c0_4, %c0_5] : memref<64x64xf32, #tpu.memory_space<vmem>>, vector<64x64xf32>
    %cst_6 = arith.constant dense<0.000000e+00> : vector<64x128xf32>
    %6 = tpu.matmul %5, %4, %cst_6 {dimension_numbers = #tpu.dot_dimension_numbers<[1], [0], [0], [1], [0, 0, 1, 1], [], []>} : vector<64x64xf32>, vector<64x128xf32>, vector<64x128xf32> -> vector<64x128xf32>
    %c0_7 = arith.constant 0 : index
    %c0_8 = arith.constant 0 : index
    %7 = vector.load %arg4[%c0_7, %c0_8] : memref<64x1xf32, #tpu.memory_space<vmem>>, vector<64x1xf32>
    %8 = vector.broadcast %7 : vector<64x1xf32> to vector<64x128xf32>
    %9 = arith.addf %6, %8 : vector<64x128xf32>
    %cst_9 = arith.constant 0.000000e+00 : f32
    %10 = vector.broadcast %cst_9 : f32 to vector<64x128xf32>
    %11 = arith.maximumf %9, %10 : vector<64x128xf32>
    %c0_10 = arith.constant 0 : index
    %c0_11 = arith.constant 0 : index
    %12 = vector.load %arg5[%c0_10, %c0_11] : memref<1x64xf32, #tpu.memory_space<vmem>>, vector<1x64xf32>
    %cst_12 = arith.constant dense<0.000000e+00> : vector<1x128xf32>
    %13 = tpu.matmul %12, %11, %cst_12 {dimension_numbers = #tpu.dot_dimension_numbers<[1], [0], [0], [1], [0, 0, 1, 1], [], []>} : vector<1x64xf32>, vector<64x128xf32>, vector<1x128xf32> -> vector<1x128xf32>
    %c0_13 = arith.constant 0 : index
    %c0_14 = arith.constant 0 : index
    %14 = vector.load %arg6[%c0_13, %c0_14] : memref<1x1xf32, #tpu.memory_space<vmem>>, vector<1x1xf32>
    %15 = vector.broadcast %14 : vector<1x1xf32> to vector<1x128xf32>
    %16 = arith.addf %13, %15 : vector<1x128xf32>
    %c0_15 = arith.constant 0 : index
    %c0_16 = arith.constant 0 : index
    %17 = vector.load %arg7[%c0_15, %c0_16] : memref<1x128xf32, #tpu.memory_space<vmem>>, vector<1x128xf32>
    tpu.vector_store %arg7[%c0_15, %c0_16], %16 {strides = array<i32>} : memref<1x128xf32, #tpu.memory_space<vmem>>, vector<1x128xf32>,
    return
  }
  func.func @transform_0(%arg0: i32) -> (i32, i32) {
    %c0_i32 = arith.constant 0 : i32
    %c0_i32_0 = arith.constant 0 : i32
    return %c0_i32, %arg0 : i32, i32
  }
  func.func @transform_1(%arg0: i32) -> (i32, i32) {
    %c0_i32 = arith.constant 0 : i32
    %c0_i32_0 = arith.constant 0 : i32
    %c0_i32_1 = arith.constant 0 : i32
    return %c0_i32, %c0_i32_0 : i32, i32
  }
  func.func @transform_2(%arg0: i32) -> (i32, i32) {
    %c0_i32 = arith.constant 0 : i32
    %c0_i32_0 = arith.constant 0 : i32
    %c0_i32_1 = arith.constant 0 : i32
    return %c0_i32, %c0_i32_0 : i32, i32
  }
  func.func @transform_3(%arg0: i32) -> (i32, i32) {
    %c0_i32 = arith.constant 0 : i32
    %c0_i32_0 = arith.constant 0 : i32
    %c0_i32_1 = arith.constant 0 : i32
    return %c0_i32, %c0_i32_0 : i32, i32
  }
  func.func @transform_4(%arg0: i32) -> (i32, i32) {
    %c0_i32 = arith.constant 0 : i32
    %c0_i32_0 = arith.constant 0 : i32
    %c0_i32_1 = arith.constant 0 : i32
    return %c0_i32, %c0_i32_0 : i32, i32
  }
  func.func @transform_5(%arg0: i32) -> (i32, i32) {
    %c0_i32 = arith.constant 0 : i32
    %c0_i32_0 = arith.constant 0 : i32
    %c0_i32_1 = arith.constant 0 : i32
    return %c0_i32, %c0_i32_0 : i32, i32
  }
  func.func @transform_6(%arg0: i32) -> (i32, i32) {
    %c0_i32 = arith.constant 0 : i32
    %c0_i32_0 = arith.constant 0 : i32
    return %c0_i32, %arg0 : i32, i32
  }
}

</mosaic_0001>

<llo_original>
// kernel: tpu_custom_call.1
$region0: #{tpu_custom_call.1}
  #allocation0 [shape = 'u32[]', space=smem, size = 0x4, offset = 0x4, fixed_abs, tag = 'smem constant byte address 0x4 - core index']
  #allocation1 [shape = 'u32[144,128]{1,0:T(1,128)}', space=vmem, size = 0x12000, scoped, tag = 'internal scratch']
  #allocation2 [shape = 'f32[1,1]{1,0:T(1,128)S(1)}', space=vmem, size = 0x200, scoped, tag = 'scoped memory for tpu_custom_call.1']
  %s0 = inlined_call_operand.vmem [shape: f32[8,384], index: 0, kind: input, shape index: {}]
  %s1 = inlined_call_operand.vmem [shape: f32[64,8], index: 1, kind: input, shape index: {}]
  %s2 = inlined_call_operand.vmem [shape: f32[64,64], index: 2, kind: input, shape index: {}]
  %s3 = inlined_call_operand.vmem [shape: f32[64,1], index: 3, kind: input, shape index: {}]
  %s4 = inlined_call_operand.vmem [shape: f32[1,64], index: 4, kind: input, shape index: {}]
  %s5 = inlined_call_operand.<no memory space> [shape: f32[1,1], index: 5, kind: input, shape index: {}]
  %s6 = inlined_call_operand.hbm [shape: f32[1,384], index: 6, kind: output, shape index: {}]
  %s7 = sld [smem:[#allocation0]]
  $region57: #{tpu_custom_call.1} parent=0
    _
  %s9 = ssub.s32 1, %s7
  %s10 = scalar_select 0, %s9, %s7
  %v11 = vstv %s5
  %12 = vst [vmem:[#allocation2] sm:$0x1] %v11
  $region1: #{tpu_custom_call.1} parent=0
    #allocation3 [shape = 'u8[1024]{0}', space=vmem, size = 0x400, scoped, tag = 'output window, operand 0']
    #allocation4 [shape = 's32[2]{0}', space=sflag, size = 0x8, scoped, tag = 'scoped memory for tpu_custom_call.1']
    %13 = vsyncpa [#allocation4], 0
    %s14 = scalar_lea.sflag [#allocation4], 1
    %15 = vsyncpa %s14, 0
    loop: start=0, step=1, limit=5
    $region2: #{tpu_custom_call.1} parent=1 // loop_pre_header
      _
    $region3: #{tpu_custom_call.1} parent=1 // loop_header
      %s17 = sphi 0, %s21
      %p18 = scmp.ge.s32.totalorder %s17, 5
      %s27 = sphi 0, %s29
      %s30 = sphi 0, %s27
      %s31 = sphi 0, %s30
      %s47 = sphi 0, %s31
      %s51 = sphi 0, %s51
      %s53 = sphi 0, %s51
      %s54 = sphi 0, %s53
      %s68 = sphi 0, %s54
      %s72 = sphi 0, %s72
      %s74 = sphi 0, %s72
      %s75 = sphi 0, %s74
      %s89 = sphi 0, %s75
      %s93 = sphi 0, %s93
      %s95 = sphi 0, %s93
      %s96 = sphi 0, %s95
      %s110 = sphi 0, %s96
      %s114 = sphi 0, %s114
      %s116 = sphi 0, %s114
      %s117 = sphi 0, %s116
      %s131 = sphi 0, %s117
      %s135 = sphi 0, %s135
      %s137 = sphi 0, %s135
      %s138 = sphi 0, %s137
      %s152 = sphi 0, %s138
      %s158 = sphi 0, %s160
      %s161 = sphi 0, %s158
      %s162 = sphi 0, %s161
      %s178 = sphi 0, %s162
    $region4: #{tpu_custom_call.1} parent=1 // loop_header_branch
      %20 = sbr.rel (%p18) target = $region8
    $region5: #{tpu_custom_call.1} parent=1 // loop_body
      %s22 = ssub.s32 %s17, 1
      %s23 = ssub.s32 %s17, 2
      %s24 = sadd.s32 %s17, 1
      %s25 = ssub.s32 %s17, %s24
      %p26 = scmp.eq.s32.totalorder %s25, 0
      %s28 = sadd.s32 %s27, 1
      %s29 = scalar_select %p26, %s27, %s28
      %p32 = pneg %p26
      %p33 = scmp.eq.s32.totalorder %s17, 2
      %p34 = por %p32, %p33
      %p35 = scmp.ne.s32.totalorder %s27, %s30
      %p36 = scmp.eq.s32.totalorder %s17, 0
      %p37 = por %p35, %p36
      %p38 = scmp.ne.s32.totalorder %s27, %s30
      %p39 = scmp.eq.s32.totalorder %s22, 2
      %p40 = por %p38, %p39
      %p41 = scmp.ne.s32.totalorder %s30, %s31
      %p42 = scmp.eq.s32.totalorder %s22, 0
      %p43 = por %p41, %p42
      %p44 = scmp.ne.s32.totalorder %s30, %s31
      %p45 = scmp.eq.s32.totalorder %s23, 2
      %p46 = por %p44, %p45
      %p48 = scmp.ne.s32.totalorder %s31, %s47
      %p49 = scmp.eq.s32.totalorder %s23, 0
      %p50 = por %p48, %p49
      %s52 = sadd.s32 %s51, 1
      %p55 = scmp.eq.s32.totalorder %s17, 2
      %p56 = scmp.ne.s32.totalorder %s51, %s53
      %p57 = scmp.eq.s32.totalorder %s17, 0
      %p58 = por %p56, %p57
      %p59 = scmp.ne.s32.totalorder %s51, %s53
      %p60 = scmp.eq.s32.totalorder %s22, 2
      %p61 = por %p59, %p60
      %p62 = scmp.ne.s32.totalorder %s53, %s54
      %p63 = scmp.eq.s32.totalorder %s22, 0
      %p64 = por %p62, %p63
      %p65 = scmp.ne.s32.totalorder %s53, %s54
      %p66 = scmp.eq.s32.totalorder %s23, 2
      %p67 = por %p65, %p66
      %p69 = scmp.ne.s32.totalorder %s54, %s68
      %p70 = scmp.eq.s32.totalorder %s23, 0
      %p71 = por %p69, %p70
      %s73 = sadd.s32 %s72, 1
      %p76 = scmp.eq.s32.totalorder %s17, 2
      %p77 = scmp.ne.s32.totalorder %s72, %s74
      %p78 = scmp.eq.s32.totalorder %s17, 0
      %p79 = por %p77, %p78
      %p80 = scmp.ne.s32.totalorder %s72, %s74
      %p81 = scmp.eq.s32.totalorder %s22, 2
      %p82 = por %p80, %p81
      %p83 = scmp.ne.s32.totalorder %s74, %s75
      %p84 = scmp.eq.s32.totalorder %s22, 0
      %p85 = por %p83, %p84
      %p86 = scmp.ne.s32.totalorder %s74, %s75
      %p87 = scmp.eq.s32.totalorder %s23, 2
      %p88 = por %p86, %p87
      %p90 = scmp.ne.s32.totalorder %s75, %s89
      %p91 = scmp.eq.s32.totalorder %s23, 0
      %p92 = por %p90, %p91
      %s94 = sadd.s32 %s93, 1
      %p97 = scmp.eq.s32.totalorder %s17, 2
      %p98 = scmp.ne.s32.totalorder %s93, %s95
      %p99 = scmp.eq.s32.totalorder %s17, 0
      %p100 = por %p98, %p99
      %p101 = scmp.ne.s32.totalorder %s93, %s95
      %p102 = scmp.eq.s32.totalorder %s22, 2
      %p103 = por %p101, %p102
      %p104 = scmp.ne.s32.totalorder %s95, %s96
      %p105 = scmp.eq.s32.totalorder %s22, 0
      %p106 = por %p104, %p105
      %p107 = scmp.ne.s32.totalorder %s95, %s96
      %p108 = scmp.eq.s32.totalorder %s23, 2
      %p109 = por %p107, %p108
      %p111 = scmp.ne.s32.totalorder %s96, %s110
      %p112 = scmp.eq.s32.totalorder %s23, 0
      %p113 = por %p111, %p112
      %s115 = sadd.s32 %s114, 1
      %p118 = scmp.eq.s32.totalorder %s17, 2
      %p119 = scmp.ne.s32.totalorder %s114, %s116
      %p120 = scmp.eq.s32.totalorder %s17, 0
      %p121 = por %p119, %p120
      %p122 = scmp.ne.s32.totalorder %s114, %s116
      %p123 = scmp.eq.s32.totalorder %s22, 2
      %p124 = por %p122, %p123
      %p125 = scmp.ne.s32.totalorder %s116, %s117
      %p126 = scmp.eq.s32.totalorder %s22, 0
      %p127 = por %p125, %p126
      %p128 = scmp.ne.s32.totalorder %s116, %s117
      %p129 = scmp.eq.s32.totalorder %s23, 2
      %p130 = por %p128, %p129
      %p132 = scmp.ne.s32.totalorder %s117, %s131
      %p133 = scmp.eq.s32.totalorder %s23, 0
      %p134 = por %p132, %p133
      %s136 = sadd.s32 %s135, 1
      %p139 = scmp.eq.s32.totalorder %s17, 2
      %p140 = scmp.ne.s32.totalorder %s135, %s137
      %p141 = scmp.eq.s32.totalorder %s17, 0
      %p142 = por %p140, %p141
      %p143 = scmp.ne.s32.totalorder %s135, %s137
      %p144 = scmp.eq.s32.totalorder %s22, 2
      %p145 = por %p143, %p144
      %p146 = scmp.ne.s32.totalorder %s137, %s138
      %p147 = scmp.eq.s32.totalorder %s22, 0
      %p148 = por %p146, %p147
      %p149 = scmp.ne.s32.totalorder %s137, %s138
      %p150 = scmp.eq.s32.totalorder %s23, 2
      %p151 = por %p149, %p150
      %p153 = scmp.ne.s32.totalorder %s138, %s152
      %p154 = scmp.eq.s32.totalorder %s23, 0
      %p155 = por %p153, %p154
      %s156 = ssub.s32 %s17, %s24
      %p157 = scmp.eq.s32.totalorder %s156, 0
      %s159 = sadd.s32 %s158, 1
      %s160 = scalar_select %p157, %s158, %s159
      %p163 = pneg %p157
      %p164 = scmp.eq.s32.totalorder %s17, 2
      %p165 = por %p163, %p164
      %p166 = scmp.ne.s32.totalorder %s158, %s161
      %p167 = scmp.eq.s32.totalorder %s17, 0
      %p168 = por %p166, %p167
      %p169 = scmp.ne.s32.totalorder %s158, %s161
      %p170 = scmp.eq.s32.totalorder %s22, 2
      %p171 = por %p169, %p170
      %p172 = scmp.ne.s32.totalorder %s161, %s162
      %p173 = scmp.eq.s32.totalorder %s22, 0
      %p174 = por %p172, %p173
      %p175 = scmp.ne.s32.totalorder %s161, %s162
      %p176 = scmp.eq.s32.totalorder %s23, 2
      %p177 = por %p175, %p176
      %p179 = scmp.ne.s32.totalorder %s162, %s178
      %p180 = scmp.eq.s32.totalorder %s23, 0
      %p181 = por %p179, %p180
      %p182 = scmp.le.s32.totalorder 1, %s17
      %p183 = scmp.lt.s32.totalorder %s17, 4
      %p184 = pnand %p182, %p183
      %p185 = pneg %p184
      // Predicated region
      $region9: #{tpu_custom_call.1} parent=5 // pred_check
        _
      $region10: #{tpu_custom_call.1} parent=5 // pred_check_branch
        %187 = sbr.rel (%p184) target = $region12
      $region11: #{tpu_custom_call.1} parent=5 // pred_region
        %s188 = ssub.s32 %s17, 1
        // Predicated region
        $region13: #{tpu_custom_call.1} parent=11 // pred_check
          %p189 = pneg %p64
        $region14: #{tpu_custom_call.1} parent=11 // pred_check_branch
          %191 = sbr.rel (%p189) target = $region16
        $region15: #{tpu_custom_call.1} parent=11 // pred_region
          _
        $region16: #{tpu_custom_call.1} parent=11 // pred_fallthru
          _
        // Predicated region
        $region17: #{tpu_custom_call.1} parent=11 // pred_check
          %p192 = pneg %p85
        $region18: #{tpu_custom_call.1} parent=11 // pred_check_branch
          %194 = sbr.rel (%p192) target = $region20
        $region19: #{tpu_custom_call.1} parent=11 // pred_region
          _
        $region20: #{tpu_custom_call.1} parent=11 // pred_fallthru
          _
        // Predicated region
        $region21: #{tpu_custom_call.1} parent=11 // pred_check
          %p195 = pneg %p106
        $region22: #{tpu_custom_call.1} parent=11 // pred_check_branch
          %197 = sbr.rel (%p195) target = $region24
        $region23: #{tpu_custom_call.1} parent=11 // pred_region
          _
        $region24: #{tpu_custom_call.1} parent=11 // pred_fallthru
          _
        // Predicated region
        $region25: #{tpu_custom_call.1} parent=11 // pred_check
          %p198 = pneg %p127
        $region26: #{tpu_custom_call.1} parent=11 // pred_check_branch
          %200 = sbr.rel (%p198) target = $region28
        $region27: #{tpu_custom_call.1} parent=11 // pred_region
          _
        $region28: #{tpu_custom_call.1} parent=11 // pred_fallthru
          _
        // Predicated region
        $region29: #{tpu_custom_call.1} parent=11 // pred_check
          %p201 = pneg %p148
        $region30: #{tpu_custom_call.1} parent=11 // pred_check_branch
          %203 = sbr.rel (%p201) target = $region32
        $region31: #{tpu_custom_call.1} parent=11 // pred_region
          _
        $region32: #{tpu_custom_call.1} parent=11 // pred_fallthru
          _
      $region12: #{tpu_custom_call.1} parent=5 // pred_fallthru
        _
      %p204 = scmp.lt.s32.totalorder %s17, 3
      // Predicated region
      $region33: #{tpu_custom_call.1} parent=5 // pred_check
        %p205 = pneg %p204
      $region34: #{tpu_custom_call.1} parent=5 // pred_check_branch
        %207 = sbr.rel (%p205) target = $region36
      $region35: #{tpu_custom_call.1} parent=5 // pred_region
        // Predicated region
        $region37: #{tpu_custom_call.1} parent=35 // pred_check
          %p208 = pneg %p37
        $region38: #{tpu_custom_call.1} parent=35 // pred_check_branch
          %210 = sbr.rel (%p208) target = $region40
        $region39: #{tpu_custom_call.1} parent=35 // pred_region
          %p211 = scmp.lt.s32.totalorder %s17, 2
          %s212 = scalar_select %p211, %s17, 2
          %s213 = smul.addr %s212, 8
          %s214 = scalar_lea.vmem %s0, %s213
        $region40: #{tpu_custom_call.1} parent=35 // pred_fallthru
          _
      $region36: #{tpu_custom_call.1} parent=5 // pred_fallthru
        _
      %p215 = scmp.le.s32.totalorder 1, %s17
      %p216 = scmp.lt.s32.totalorder %s17, 4
      %p217 = pnand %p215, %p216
      %p218 = pneg %p217
      // Predicated region
      $region41: #{tpu_custom_call.1} parent=5 // pred_check
        _
      $region42: #{tpu_custom_call.1} parent=5 // pred_check_branch
        %220 = sbr.rel (%p217) target = $region44
      $region43: #{tpu_custom_call.1} parent=5 // pred_region
        %s221 = ssub.s32 %s17, 1
        %p222 = scmp.lt.s32.totalorder %s22, 2
        %s223 = scalar_select %p222, %s22, 2
        %s224 = smul.addr %s223, 8
        %s225 = scalar_lea.vmem %s0, %s224
        %p226 = pneg %p43
        %p227 = pneg %p40
        %p228 = pneg %p64
        %p229 = pneg %p61
        %p230 = pneg %p85
        %p231 = pneg %p82
        %p232 = pneg %p106
        %p233 = pneg %p103
        %p234 = pneg %p127
        %p235 = pneg %p124
        %p236 = pneg %p148
        %p237 = pneg %p145
        %p238 = pneg %p174
        %p239 = pneg %p171
        %s240 = sand.u32 %s161, 1
        %s241 = scalar_lea.sflag [#allocation4], %s240
        %s242 = sand.u32 %s161, 1
        %s243 = scalar_lea.vmem [#allocation3], %s242
        %p244 = scmp.lt.s32.totalorder %s22, 2
        %s245 = scalar_select %p244, %s22, 2
        %s246 = smul.addr %s245, 8
        %s247 = scalar_lea.vmem %s0, %s246
        %v248 = vld [vmem:[%s1] sm:$0xff]
        %v249 = vld [vmem:[%s1 + $0x8] sm:$0xff]
        %v250 = vld [vmem:[%s1 + $0x10] sm:$0xff]
        %v251 = vld [vmem:[%s1 + $0x18] sm:$0xff]
        %v252 = vld [vmem:[%s1 + $0x20] sm:$0xff]
        %v253 = vld [vmem:[%s1 + $0x28] sm:$0xff]
        %v254 = vld [vmem:[%s1 + $0x30] sm:$0xff]
        %v255 = vld [vmem:[%s1 + $0x38] sm:$0xff]
        %v256 = vld [vmem:[%s247] sm:$0xff]
        %vm257 = vcmask 64512
        %v259 = vsel %vm257, %v248, 0
        %v262 = vsel %vm257, %v249, 0
        %v265 = vsel %vm257, %v250, 0
        %v268 = vsel %vm257, %v251, 0
        %v271 = vsel %vm257, %v252, 0
        %v274 = vsel %vm257, %v253, 0
        %v277 = vsel %vm257, %v254, 0
        %v280 = vsel %vm257, %v255, 0
        %282 = vmatprep.subr.mxu0 0.0
        %283 = vmatpush1.msra.mxu0 0.0
        %284 = vmatprep.subr.mxu0 0.0
        %285 = vmatpush1.msra.mxu0 0.0
        %286 = vmatprep.subr.mxu0 0.0
        %287 = vmatpush1.msra.mxu0 0.0
        %288 = vmatprep.subr.mxu0 0.0
        %289 = vmatpush1.msra.mxu0 0.0
        %290 = vmatprep.subr.mxu0 0.0
        %291 = vmatpush1.msra.mxu0 0.0
        %292 = vmatprep.subr.mxu0 0.0
        %293 = vmatpush1.msra.mxu0 0.0
        %294 = vmatprep.subr.mxu0 0.0
        %295 = vmatpush1.msra.mxu0 0.0
        %296 = vmatprep.subr.mxu0 0.0
        %297 = vmatpush1.msra.mxu0 0.0
        %298 = vmatprep.subr.mxu0 0.0
        %299 = vmatpush1.msra.mxu0 0.0
        %300 = vmatprep.subr.mxu0 0.0
        %301 = vmatpush1.msra.mxu0 0.0
        %302 = vmatprep.subr.mxu0 0.0
        %303 = vmatpush1.msra.mxu0 0.0
        %304 = vmatprep.subr.mxu0 0.0
        %305 = vmatpush1.msra.mxu0 0.0
        %306 = vmatprep.subr.mxu0 0.0
        %307 = vmatpush1.msra.mxu0 0.0
        %308 = vmatprep.subr.mxu0 0.0
        %309 = vmatpush1.msra.mxu0 0.0
        %310 = vmatprep.subr.mxu0 0.0
        %311 = vmatpush1.msra.mxu0 0.0
        %312 = vmatprep.subr.mxu0 0.0
        %313 = vmatpush1.msra.mxu0 %v256
        %314 = vmatprep.subr.mxu0 0.0
        %315 = vmatpush2.msra.mxu0 0.0
        %316 = vmatprep.subr.mxu0 0.0
        %317 = vmatpush2.msra.mxu0 0.0
        %318 = vmatprep.subr.mxu0 0.0
        %319 = vmatpush2.msra.mxu0 0.0
        %320 = vmatprep.subr.mxu0 0.0
        %321 = vmatpush2.msra.mxu0 0.0
        %322 = vmatprep.subr.mxu0 0.0
        %323 = vmatpush2.msra.mxu0 0.0
        %324 = vmatprep.subr.mxu0 0.0
        %325 = vmatpush2.msra.mxu0 0.0
        %326 = vmatprep.subr.mxu0 0.0
        %327 = vmatpush2.msra.mxu0 0.0
        %328 = vmatprep.subr.mxu0 0.0
        %329 = vmatpush2.msra.mxu0 0.0
        %330 = vmatprep.subr.mxu0 0.0
        %331 = vmatpush2.msra.mxu0 0.0
        %332 = vmatprep.subr.mxu0 0.0
        %333 = vmatpush2.msra.mxu0 0.0
        %334 = vmatprep.subr.mxu0 0.0
        %335 = vmatpush2.msra.mxu0 0.0
        %336 = vmatprep.subr.mxu0 0.0
        %337 = vmatpush2.msra.mxu0 0.0
        %338 = vmatprep.subr.mxu0 0.0
        %339 = vmatpush2.msra.mxu0 0.0
        %340 = vmatprep.subr.mxu0 0.0
        %341 = vmatpush2.msra.mxu0 0.0
        %342 = vmatprep.subr.mxu0 0.0
        %343 = vmatpush2.msra.mxu0 0.0
        %344 = vmatprep.subr.mxu0 0.0
        %345 = vmatpush2.msra.mxu0 0.0
        %346 = vmatprep.mubr.f32.mxu0 0.0
        %347 = vmatmul.mubr.f32.gmra.mxu0 %v259
        %v348 = vpop.f32.mrf.mxu0
        %v349 = vadd.f32 0.0, %v348
        %v350 = vpop.f32.mrf.mxu0
        %351 = vmatprep.mubr.f32.mxu0 0.0
        %352 = vmatmul.mubr.f32.gmra.mxu0 %v262
        %v353 = vpop.f32.mrf.mxu0
        %v354 = vadd.f32 0.0, %v353
        %v355 = vpop.f32.mrf.mxu0
        %356 = vmatprep.mubr.f32.mxu0 0.0
        %357 = vmatmul.mubr.f32.gmra.mxu0 %v265
        %v358 = vpop.f32.mrf.mxu0
        %v359 = vadd.f32 0.0, %v358
        %v360 = vpop.f32.mrf.mxu0
        %361 = vmatprep.mubr.f32.mxu0 0.0
        %362 = vmatmul.mubr.f32.gmra.mxu0 %v268
        %v363 = vpop.f32.mrf.mxu0
        %v364 = vadd.f32 0.0, %v363
        %v365 = vpop.f32.mrf.mxu0
        %366 = vmatprep.mubr.f32.mxu0 0.0
        %367 = vmatmul.mubr.f32.gmra.mxu0 %v271
        %v368 = vpop.f32.mrf.mxu0
        %v369 = vadd.f32 0.0, %v368
        %v370 = vpop.f32.mrf.mxu0
        %371 = vmatprep.mubr.f32.mxu0 0.0
        %372 = vmatmul.mubr.f32.gmra.mxu0 %v274
        %v373 = vpop.f32.mrf.mxu0
        %v374 = vadd.f32 0.0, %v373
        %v375 = vpop.f32.mrf.mxu0
        %376 = vmatprep.mubr.f32.mxu0 0.0
        %377 = vmatmul.mubr.f32.gmra.mxu0 %v277
        %v378 = vpop.f32.mrf.mxu0
        %v379 = vadd.f32 0.0, %v378
        %v380 = vpop.f32.mrf.mxu0
        %381 = vmatprep.mubr.f32.mxu0 0.0
        %382 = vmatmul.mubr.f32.gmra.mxu0 %v280
        %v383 = vpop.f32.mrf.mxu0
        %v384 = vadd.f32 0.0, %v383
        %v385 = vpop.f32.mrf.mxu0
        %386 = vdwg.mxu0
        %v387 = vmax.f32 %v349, 0.0
        %v388 = vmax.f32 %v354, 0.0
        %v389 = vmax.f32 %v359, 0.0
        %v390 = vmax.f32 %v364, 0.0
        %v391 = vmax.f32 %v369, 0.0
        %v392 = vmax.f32 %v374, 0.0
        %v393 = vmax.f32 %v379, 0.0
        %v394 = vmax.f32 %v384, 0.0
        %v395 = vld [vmem:[%s2] sm:$0xff]
        %v396 = vld [vmem:[%s2 + $0x8] sm:$0xff]
        %v397 = vld [vmem:[%s2 + $0x10] sm:$0xff]
        %v398 = vld [vmem:[%s2 + $0x18] sm:$0xff]
        %v399 = vld [vmem:[%s2 + $0x20] sm:$0xff]
        %v400 = vld [vmem:[%s2 + $0x28] sm:$0xff]
        %v401 = vld [vmem:[%s2 + $0x30] sm:$0xff]
        %v402 = vld [vmem:[%s2 + $0x38] sm:$0xff]
        %v403 = vld [vmem:[%s3] sm:$0xff]
        %v404 = vld [vmem:[%s3 + $0x8] sm:$0xff]
        %v405 = vld [vmem:[%s3 + $0x10] sm:$0xff]
        %v406 = vld [vmem:[%s3 + $0x18] sm:$0xff]
        %v407 = vld [vmem:[%s3 + $0x20] sm:$0xff]
        %v408 = vld [vmem:[%s3 + $0x28] sm:$0xff]
        %v409 = vld [vmem:[%s3 + $0x30] sm:$0xff]
        %v410 = vld [vmem:[%s3 + $0x38] sm:$0xff]
        %412 = vset.pattern.permute.xlu0 0
        %413 = vperm.xlu0 %412, %v403
        %v414 = vpop.permute.xlu0 %413
        %417 = vset.pattern.permute.xlu0 0
        %418 = vperm.xlu0 %417, %v404
        %v419 = vpop.permute.xlu0 %418
        %422 = vset.pattern.permute.xlu0 0
        %423 = vperm.xlu0 %422, %v405
        %v424 = vpop.permute.xlu0 %423
        %427 = vset.pattern.permute.xlu0 0
        %428 = vperm.xlu0 %427, %v406
        %v429 = vpop.permute.xlu0 %428
        %432 = vset.pattern.permute.xlu0 0
        %433 = vperm.xlu0 %432, %v407
        %v434 = vpop.permute.xlu0 %433
        %437 = vset.pattern.permute.xlu0 0
        %438 = vperm.xlu0 %437, %v408
        %v439 = vpop.permute.xlu0 %438
        %442 = vset.pattern.permute.xlu0 0
        %443 = vperm.xlu0 %442, %v409
        %v444 = vpop.permute.xlu0 %443
        %447 = vset.pattern.permute.xlu0 0
        %448 = vperm.xlu0 %447, %v410
        %v449 = vpop.permute.xlu0 %448
        %vm451 = vcmask 523264
        %v453 = vsel %vm451, %v395, 0
        %v456 = vsel %vm451, %v396, 0
        %v459 = vsel %vm451, %v397, 0
        %v462 = vsel %vm451, %v398, 0
        %v465 = vsel %vm451, %v399, 0
        %v468 = vsel %vm451, %v400, 0
        %v471 = vsel %vm451, %v401, 0
        %v474 = vsel %vm451, %v402, 0
        %476 = vmatprep.subr.mxu0 0.0
        %477 = vmatpush1.msra.mxu0 0.0
        %478 = vmatprep.subr.mxu0 0.0
        %479 = vmatpush1.msra.mxu0 0.0
        %480 = vmatprep.subr.mxu0 0.0
        %481 = vmatpush1.msra.mxu0 0.0
        %482 = vmatprep.subr.mxu0 0.0
        %483 = vmatpush1.msra.mxu0 0.0
        %484 = vmatprep.subr.mxu0 0.0
        %485 = vmatpush1.msra.mxu0 0.0
        %486 = vmatprep.subr.mxu0 0.0
        %487 = vmatpush1.msra.mxu0 0.0
        %488 = vmatprep.subr.mxu0 0.0
        %489 = vmatpush1.msra.mxu0 0.0
        %490 = vmatprep.subr.mxu0 0.0
        %491 = vmatpush1.msra.mxu0 0.0
        %492 = vmatprep.subr.mxu0 0.0
        %493 = vmatpush1.msra.mxu0 %v394
        %494 = vmatprep.subr.mxu0 0.0
        %495 = vmatpush1.msra.mxu0 %v393
        %496 = vmatprep.subr.mxu0 0.0
        %497 = vmatpush1.msra.mxu0 %v392
        %498 = vmatprep.subr.mxu0 0.0
        %499 = vmatpush1.msra.mxu0 %v391
        %500 = vmatprep.subr.mxu0 0.0
        %501 = vmatpush1.msra.mxu0 %v390
        %502 = vmatprep.subr.mxu0 0.0
        %503 = vmatpush1.msra.mxu0 %v389
        %504 = vmatprep.subr.mxu0 0.0
        %505 = vmatpush1.msra.mxu0 %v388
        %506 = vmatprep.subr.mxu0 0.0
        %507 = vmatpush1.msra.mxu0 %v387
        %508 = vmatprep.subr.mxu0 0.0
        %509 = vmatpush2.msra.mxu0 0.0
        %510 = vmatprep.subr.mxu0 0.0
        %511 = vmatpush2.msra.mxu0 0.0
        %512 = vmatprep.subr.mxu0 0.0
        %513 = vmatpush2.msra.mxu0 0.0
        %514 = vmatprep.subr.mxu0 0.0
        %515 = vmatpush2.msra.mxu0 0.0
        %516 = vmatprep.subr.mxu0 0.0
        %517 = vmatpush2.msra.mxu0 0.0
        %518 = vmatprep.subr.mxu0 0.0
        %519 = vmatpush2.msra.mxu0 0.0
        %520 = vmatprep.subr.mxu0 0.0
        %521 = vmatpush2.msra.mxu0 0.0
        %522 = vmatprep.subr.mxu0 0.0
        %523 = vmatpush2.msra.mxu0 0.0
        %524 = vmatprep.subr.mxu0 0.0
        %525 = vmatpush2.msra.mxu0 0.0
        %526 = vmatprep.subr.mxu0 0.0
        %527 = vmatpush2.msra.mxu0 0.0
        %528 = vmatprep.subr.mxu0 0.0
        %529 = vmatpush2.msra.mxu0 0.0
        %530 = vmatprep.subr.mxu0 0.0
        %531 = vmatpush2.msra.mxu0 0.0
        %532 = vmatprep.subr.mxu0 0.0
        %533 = vmatpush2.msra.mxu0 0.0
        %534 = vmatprep.subr.mxu0 0.0
        %535 = vmatpush2.msra.mxu0 0.0
        %536 = vmatprep.subr.mxu0 0.0
        %537 = vmatpush2.msra.mxu0 0.0
        %538 = vmatprep.subr.mxu0 0.0
        %539 = vmatpush2.msra.mxu0 0.0
        %540 = vmatprep.mubr.f32.mxu0 0.0
        %541 = vmatmul.mubr.f32.gmra.mxu0 %v453
        %v542 = vpop.f32.mrf.mxu0
        %v543 = vadd.f32 %v414, %v542
        %v544 = vpop.f32.mrf.mxu0
        %545 = vmatprep.mubr.f32.mxu0 0.0
        %546 = vmatmul.mubr.f32.gmra.mxu0 %v456
        %v547 = vpop.f32.mrf.mxu0
        %v548 = vadd.f32 %v419, %v547
        %v549 = vpop.f32.mrf.mxu0
        %550 = vmatprep.mubr.f32.mxu0 0.0
        %551 = vmatmul.mubr.f32.gmra.mxu0 %v459
        %v552 = vpop.f32.mrf.mxu0
        %v553 = vadd.f32 %v424, %v552
        %v554 = vpop.f32.mrf.mxu0
        %555 = vmatprep.mubr.f32.mxu0 0.0
        %556 = vmatmul.mubr.f32.gmra.mxu0 %v462
        %v557 = vpop.f32.mrf.mxu0
        %v558 = vadd.f32 %v429, %v557
        %v559 = vpop.f32.mrf.mxu0
        %560 = vmatprep.mubr.f32.mxu0 0.0
        %561 = vmatmul.mubr.f32.gmra.mxu0 %v465
        %v562 = vpop.f32.mrf.mxu0
        %v563 = vadd.f32 %v434, %v562
        %v564 = vpop.f32.mrf.mxu0
        %565 = vmatprep.mubr.f32.mxu0 0.0
        %566 = vmatmul.mubr.f32.gmra.mxu0 %v468
        %v567 = vpop.f32.mrf.mxu0
        %v568 = vadd.f32 %v439, %v567
        %v569 = vpop.f32.mrf.mxu0
        %570 = vmatprep.mubr.f32.mxu0 0.0
        %571 = vmatmul.mubr.f32.gmra.mxu0 %v471
        %v572 = vpop.f32.mrf.mxu0
        %v573 = vadd.f32 %v444, %v572
        %v574 = vpop.f32.mrf.mxu0
        %575 = vmatprep.mubr.f32.mxu0 0.0
        %576 = vmatmul.mubr.f32.gmra.mxu0 %v474
        %v577 = vpop.f32.mrf.mxu0
        %v578 = vadd.f32 %v449, %v577
        %v579 = vpop.f32.mrf.mxu0
        %580 = vdwg.mxu0
        %v581 = vmax.f32 %v543, 0.0
        %v582 = vmax.f32 %v548, 0.0
        %v583 = vmax.f32 %v553, 0.0
        %v584 = vmax.f32 %v558, 0.0
        %v585 = vmax.f32 %v563, 0.0
        %v586 = vmax.f32 %v568, 0.0
        %v587 = vmax.f32 %v573, 0.0
        %v588 = vmax.f32 %v578, 0.0
        %v589 = vld [vmem:[%s4] sm:$0x1]
        %v590 = vld [vmem:[#allocation2] sm:$0x1]
        %592 = vset.pattern.permute.xlu0 0
        %593 = vperm.xlu0 %592, %v590
        %v594 = vpop.permute.xlu0 %593
        %v596 = vlaneseq
        %v597 = vshrl.u32 %v596, 7
        %v598 = vsub.s32 0, %v597
        %v599 = vrot.slane %v594, %v598
        %v601 = vsel %vm451, %v589, 0
        %603 = vmatprep.subr.mxu0 0.0
        %604 = vmatpush1.msra.mxu0 0.0
        %605 = vmatprep.subr.mxu0 0.0
        %606 = vmatpush1.msra.mxu0 0.0
        %607 = vmatprep.subr.mxu0 0.0
        %608 = vmatpush1.msra.mxu0 0.0
        %609 = vmatprep.subr.mxu0 0.0
        %610 = vmatpush1.msra.mxu0 0.0
        %611 = vmatprep.subr.mxu0 0.0
        %612 = vmatpush1.msra.mxu0 0.0
        %613 = vmatprep.subr.mxu0 0.0
        %614 = vmatpush1.msra.mxu0 0.0
        %615 = vmatprep.subr.mxu0 0.0
        %616 = vmatpush1.msra.mxu0 0.0
        %617 = vmatprep.subr.mxu0 0.0
        %618 = vmatpush1.msra.mxu0 0.0
        %619 = vmatprep.subr.mxu0 0.0
        %620 = vmatpush1.msra.mxu0 %v588
        %621 = vmatprep.subr.mxu0 0.0
        %622 = vmatpush1.msra.mxu0 %v587
        %623 = vmatprep.subr.mxu0 0.0
        %624 = vmatpush1.msra.mxu0 %v586
        %625 = vmatprep.subr.mxu0 0.0
        %626 = vmatpush1.msra.mxu0 %v585
        %627 = vmatprep.subr.mxu0 0.0
        %628 = vmatpush1.msra.mxu0 %v584
        %629 = vmatprep.subr.mxu0 0.0
        %630 = vmatpush1.msra.mxu0 %v583
        %631 = vmatprep.subr.mxu0 0.0
        %632 = vmatpush1.msra.mxu0 %v582
        %633 = vmatprep.subr.mxu0 0.0
        %634 = vmatpush1.msra.mxu0 %v581
        %635 = vmatprep.subr.mxu0 0.0
        %636 = vmatpush2.msra.mxu0 0.0
        %637 = vmatprep.subr.mxu0 0.0
        %638 = vmatpush2.msra.mxu0 0.0
        %639 = vmatprep.subr.mxu0 0.0
        %640 = vmatpush2.msra.mxu0 0.0
        %641 = vmatprep.subr.mxu0 0.0
        %642 = vmatpush2.msra.mxu0 0.0
        %643 = vmatprep.subr.mxu0 0.0
        %644 = vmatpush2.msra.mxu0 0.0
        %645 = vmatprep.subr.mxu0 0.0
        %646 = vmatpush2.msra.mxu0 0.0
        %647 = vmatprep.subr.mxu0 0.0
        %648 = vmatpush2.msra.mxu0 0.0
        %649 = vmatprep.subr.mxu0 0.0
        %650 = vmatpush2.msra.mxu0 0.0
        %651 = vmatprep.subr.mxu0 0.0
        %652 = vmatpush2.msra.mxu0 0.0
        %653 = vmatprep.subr.mxu0 0.0
        %654 = vmatpush2.msra.mxu0 0.0
        %655 = vmatprep.subr.mxu0 0.0
        %656 = vmatpush2.msra.mxu0 0.0
        %657 = vmatprep.subr.mxu0 0.0
        %658 = vmatpush2.msra.mxu0 0.0
        %659 = vmatprep.subr.mxu0 0.0
        %660 = vmatpush2.msra.mxu0 0.0
        %661 = vmatprep.subr.mxu0 0.0
        %662 = vmatpush2.msra.mxu0 0.0
        %663 = vmatprep.subr.mxu0 0.0
        %664 = vmatpush2.msra.mxu0 0.0
        %665 = vmatprep.subr.mxu0 0.0
        %666 = vmatpush2.msra.mxu0 0.0
        %667 = vmatprep.mubr.f32.mxu0 0.0
        %668 = vmatmul.mubr.f32.gmra.mxu0 %v601
        %v669 = vpop.f32.mrf.mxu0
        %v670 = vadd.f32 %v599, %v669
        %v671 = vpop.f32.mrf.mxu0
        %672 = vdwg.mxu0
        %673 = vst [vmem:[%s243] sm:$0x1] %v670
        %s674 = sand.u32 %s161, 1
        %s675 = scalar_lea.sflag [#allocation4], %s674
        %s676 = sand.u32 %s161, 1
        %s677 = scalar_lea.vmem [#allocation3], %s676
        // Predicated region
        $region45: #{tpu_custom_call.1} parent=43 // pred_check
          %p678 = pneg %p171
        $region46: #{tpu_custom_call.1} parent=43 // pred_check_branch
          %680 = sbr.rel (%p678) target = $region48
        $region47: #{tpu_custom_call.1} parent=43 // pred_region
          %s682 = ssub.s32 16, 16
          %683 = vsyncadd %s675, %s682
          %s684 = smul.addr %s22, 16
          %s685 = scalar_lea.hbm %s6, %s684
          %s687 = sshll.u32 %s677, 4
          %s688 = int_to_ptr.vmem [resolvable:$true] %s687
          %690 = dma.vmem_to_hbm [thread:$0]  %s688, 16, %s685, %s675
        $region48: #{tpu_custom_call.1} parent=43 // pred_fallthru
          _
      $region44: #{tpu_custom_call.1} parent=5 // pred_fallthru
        _
      %p691 = scmp.le.s32.totalorder 2, %s17
      // Predicated region
      $region49: #{tpu_custom_call.1} parent=5 // pred_check
        %p692 = pneg %p691
      $region50: #{tpu_custom_call.1} parent=5 // pred_check_branch
        %694 = sbr.rel (%p692) target = $region52
      $region51: #{tpu_custom_call.1} parent=5 // pred_region
        %s695 = ssub.s32 %s17, 2
        // Predicated region
        $region53: #{tpu_custom_call.1} parent=51 // pred_check
          %p696 = pneg %p177
        $region54: #{tpu_custom_call.1} parent=51 // pred_check_branch
          %698 = sbr.rel (%p696) target = $region56
        $region55: #{tpu_custom_call.1} parent=51 // pred_region
          %s699 = sand.u32 %s162, 1
          %s700 = scalar_lea.sflag [#allocation4], %s699
          %s701 = sand.u32 %s162, 1
          %s702 = scalar_lea.vmem [#allocation3], %s701
          %703 = dma.done %s700, 16
        $region56: #{tpu_custom_call.1} parent=51 // pred_fallthru
          _
      $region52: #{tpu_custom_call.1} parent=5 // pred_fallthru
        _
    $region6: #{tpu_custom_call.1} parent=1 // loop_footer
      %s21 = sadd.s32 1, %s17
    $region7: #{tpu_custom_call.1} parent=1 // loop_footer_branch
      %16 = sbr.rel target = $region3
    $region8: #{tpu_custom_call.1} parent=1 // loop_exit
      _
    %704 = vsyncpa [#allocation4], 1
    %s705 = scalar_lea.sflag [#allocation4], 1
    %706 = vsyncpa %s705, 1

</llo_original>
